<compile_context>
chip_gen: v7x
topology: tpu7x:2x2x1
jax: 0.10.0
libtpu: 0.0.40
codegen_flags: <defaults>
</compile_context>

<pallas_src>
import functools

import jax
import jax.numpy as jnp
from jax.experimental import pallas as pl
from jax.experimental.pallas import tpu as pltpu

LANE = 128
TARGET_BLOCK_BYTES = 4 << 20      # ~4 MiB per buffer per grid step
MIN_SPLIT_BYTES = 512 << 10       # above this, force >= 2 grid steps (v7x 2 TCs)


def _sinlu_const_kernel(x_ref, o_ref, *, alpha, beta):
    # alpha/beta baked in as compile-time constants: no SMEM loads, casts or
    # scalar->vreg broadcasts in the per-step prologue.
    x = x_ref[...].astype(jnp.float32)
    out = (x + alpha * jnp.sin(beta * x)) * jax.nn.sigmoid(x)
    o_ref[...] = out.astype(o_ref.dtype)


def _sinlu_param_kernel(params_ref, x_ref, o_ref):
    # params_ref (SMEM, f32): [alpha, beta] -- used when alpha/beta are traced
    # (learnable) scalars, matching the nn.Parameter semantics of the module.
    x = x_ref[...].astype(jnp.float32)
    a = params_ref[0]
    b = params_ref[1]
    out = (x + a * jnp.sin(b * x)) * jax.nn.sigmoid(x)
    o_ref[...] = out.astype(o_ref.dtype)


def _choose_layout(n, itemsize, total_bytes):
    """Pick (lanes, rows, block_rows, grid_steps) for a lane-dense tiling."""
    min_sub = max(8, 32 // itemsize)          # 8 f32 / 16 bf16 / 32 int8 sublanes

    # Widest lane count that divides n exactly -> no pad and no output slice.
    lanes = None
    for cand in (8 * LANE, 4 * LANE, 2 * LANE, LANE):
        if n >= cand and n % cand == 0:
            lanes = cand
            break
    if lanes is None:
        lanes = LANE                          # pad fallback: tail < 128 elements
    rows = pl.cdiv(n, lanes)

    # ~TARGET_BLOCK_BYTES per buffer, rounded down to the sublane tile.
    tgt_rows = max(min_sub,
                   (TARGET_BLOCK_BYTES // (lanes * itemsize)) // min_sub * min_sub)

    if rows <= tgt_rows:
        if total_bytes >= MIN_SPLIT_BYTES and rows >= 2 * min_sub:
            # Split mid-size tensors into >= 2 parallel steps so both v7x
            # TensorCores get work and the pipeline has something to overlap.
            block_rows = pl.cdiv(pl.cdiv(rows, 2), min_sub) * min_sub
        else:
            block_rows = rows                 # single full-extent block
    else:
        block_rows = tgt_rows

    grid_steps = pl.cdiv(rows, block_rows)    # ragged last block is masked
    return lanes, rows, block_rows, grid_steps


def sinlu(x: jax.Array, alpha, beta) -> jax.Array:
    """Elementwise SinLU(x) = (x + alpha*sin(beta*x)) * sigmoid(x), any shape."""
    orig_shape = x.shape
    dtype = x.dtype
    n = x.size
    itemsize = jnp.dtype(dtype).itemsize
    total_bytes = n * itemsize

    lanes, rows, block_rows, grid_steps = _choose_layout(n, itemsize, total_bytes)
    n_pad = rows * lanes

    x_flat = jnp.ravel(x)
    if n_pad != n:
        # Only a <128-element tail pad; padded values are sliced off below.
        # (SinLU(0) == 0, so zero padding stays harmless if that ever changes.)
        x_flat = jnp.pad(x_flat, (0, n_pad - n))
    x2d = x_flat.reshape(rows, lanes)

    block_bytes = block_rows * lanes * itemsize
    compiler_params = pltpu.CompilerParams(
        dimension_semantics=("parallel",),
        # Explicit limit: 2x(in) + 2x(out) double-buffered blocks plus slack,
        # so 4 MiB blocks also fit under v5e's smaller 16 MiB scoped default
        # and stay well inside v7x's 64 MiB physical VMEM.
        vmem_limit_bytes=int(min(64 << 20, max(16 << 20, 6 * block_bytes))),
    )
    cost = pl.CostEstimate(
        flops=22 * n,                 # sin lowers to a ~15-20 op VPU polynomial
        transcendentals=2 * n,        # sin + exp (sigmoid)
        bytes_accessed=2 * n_pad * itemsize,
    )

    x_spec = pl.BlockSpec((block_rows, lanes), lambda i: (i, 0))
    out_spec = pl.BlockSpec((block_rows, lanes), lambda i: (i, 0))
    out_shape = jax.ShapeDtypeStruct((rows, lanes), dtype)

    static_params = isinstance(alpha, (int, float)) and isinstance(beta, (int, float))
    if static_params:
        kernel = functools.partial(
            _sinlu_const_kernel, alpha=float(alpha), beta=float(beta))
        in_specs = [x_spec]
        args = (x2d,)
    else:
        kernel = _sinlu_param_kernel
        in_specs = [pl.BlockSpec(memory_space=pltpu.MemorySpace.SMEM), x_spec]
        params = jnp.stack([jnp.asarray(alpha, jnp.float32).reshape(()),
                            jnp.asarray(beta, jnp.float32).reshape(())])
        args = (params, x2d)

    out2d = pl.pallas_call(
        kernel,
        out_shape=out_shape,
        grid_spec=pltpu.PrefetchScalarGridSpec(
            num_scalar_prefetch=0,
            grid=(grid_steps,),
            in_specs=in_specs,
            out_specs=out_spec,
        ),
        compiler_params=compiler_params,
        cost_estimate=cost,
    )(*args)

    out_flat = out2d.reshape(-1)
    if n_pad != n:
        out_flat = out_flat[:n]
    return out_flat.reshape(orig_shape)


def sinlu_reference(x, alpha, beta):
    return (x + alpha * jnp.sin(beta * x)) * jax.nn.sigmoid(x)


if __name__ == "__main__":
    # Small NCHW input; SinLU.__init__ defaults a=1.0, b=1.0 (static-constant path).
    x = jax.random.normal(jax.random.PRNGKey(0), (2, 4, 16, 16), dtype=jnp.float32)
    out = jax.block_until_ready(sinlu(x, 1.0, 1.0))
    ref = sinlu_reference(x, 1.0, 1.0)
    assert out.shape == x.shape and out.dtype == x.dtype
    assert jnp.allclose(out, ref, atol=1e-5, rtol=1e-5), "mismatch (static params)"

    # Traced (learnable) alpha/beta -> SMEM params path; rows not a multiple of 8.
    a_p = jnp.asarray(2.5, jnp.float32)
    b_p = jnp.asarray(0.75, jnp.float32)
    x2 = jax.random.normal(jax.random.PRNGKey(1), (4, 33, 128), dtype=jnp.float32)
    out2 = jax.block_until_ready(sinlu(x2, a_p, b_p))
    ref2 = sinlu_reference(x2, a_p, b_p)
    assert jnp.allclose(out2, ref2, atol=1e-5, rtol=1e-5), "mismatch (SMEM params)"

    # Ragged size (n % 128 != 0): exercises the small tail-pad fallback.
    x3 = jax.random.normal(jax.random.PRNGKey(2), (3, 5, 17), dtype=jnp.float32)
    out3 = jax.block_until_ready(sinlu(x3, 5.0, 6.0))
    ref3 = sinlu_reference(x3, 5.0, 6.0)
    assert jnp.allclose(out3, ref3, atol=1e-5, rtol=1e-5), "mismatch (ragged)"

    # Mid-size tensor (1 MiB): exercises the >=2-step split with ragged masking.
    x4 = jax.random.normal(jax.random.PRNGKey(3), (256, 1024), dtype=jnp.float32)
    out4 = jax.block_until_ready(sinlu(x4, 1.0, 1.0))
    ref4 = sinlu_reference(x4, 1.0, 1.0)
    assert jnp.allclose(out4, ref4, atol=1e-5, rtol=1e-5), "mismatch (split grid)"

    print("KERNEL_OK")
</pallas_src>

<mosaic_0001>
module attributes {stable_mosaic.version = 11 : i64} {
  func.func @_sinlu_const_kernel(%arg0: i32, %arg1: memref<2x1024xf32, #tpu.memory_space<vmem>>, %arg2: memref<2x1024xf32, #tpu.memory_space<vmem>>) attributes {dimension_semantics = [#tpu.dimension_semantics<parallel>], iteration_bounds = array<i64: 1>, scalar_prefetch = 0 : i64, scratch_operands = 0 : i64, tpu.core_type = #tpu.core_type<tc>, window_params = [{transform_indices = @transform_0, window_bounds = array<i64: 2, 1024>}, {transform_indices = @transform_1, window_bounds = array<i64: 2, 1024>}]} {
    %c0 = arith.constant 0 : index
    %c0_0 = arith.constant 0 : index
    %0 = vector.load %arg1[%c0, %c0_0] : memref<2x1024xf32, #tpu.memory_space<vmem>>, vector<2x1024xf32>
    %cst = arith.constant 1.000000e+00 : f32
    %1 = vector.broadcast %cst : f32 to vector<2x1024xf32>
    %2 = arith.mulf %1, %0 : vector<2x1024xf32>
    %3 = math.sin %2 : vector<2x1024xf32>
    %cst_1 = arith.constant 1.000000e+00 : f32
    %4 = vector.broadcast %cst_1 : f32 to vector<2x1024xf32>
    %5 = arith.mulf %4, %3 : vector<2x1024xf32>
    %6 = arith.addf %0, %5 : vector<2x1024xf32>
    %7 = arith.negf %0 : vector<2x1024xf32>
    %8 = math.exp %7 : vector<2x1024xf32>
    %cst_2 = arith.constant 1.000000e+00 : f32
    %9 = vector.broadcast %cst_2 : f32 to vector<2x1024xf32>
    %10 = arith.addf %9, %8 : vector<2x1024xf32>
    %11 = arith.divf %9, %10 : vector<2x1024xf32>
    %12 = arith.mulf %6, %11 : vector<2x1024xf32>
    %c0_3 = arith.constant 0 : index
    %c0_4 = arith.constant 0 : index
    %13 = vector.load %arg2[%c0_3, %c0_4] : memref<2x1024xf32, #tpu.memory_space<vmem>>, vector<2x1024xf32>
    tpu.vector_store %arg2[%c0_3, %c0_4], %12 {strides = array<i32>} : memref<2x1024xf32, #tpu.memory_space<vmem>>, vector<2x1024xf32>,
    return
  }
  func.func @transform_0(%arg0: i32) -> (i32, i32) {
    %c0_i32 = arith.constant 0 : i32
    %c0_i32_0 = arith.constant 0 : i32
    return %arg0, %c0_i32 : i32, i32
  }
  func.func @transform_1(%arg0: i32) -> (i32, i32) {
    %c0_i32 = arith.constant 0 : i32
    %c0_i32_0 = arith.constant 0 : i32
    return %arg0, %c0_i32 : i32, i32
  }
}

</mosaic_0001>

<llo_original>
// kernel: tpu_custom_call.1
$region0: #{tpu_custom_call.1}
  #allocation0 [shape = 'u32[]', space=smem, size = 0x4, offset = 0x4, fixed_abs, tag = 'smem constant byte address 0x4 - core index']
  #allocation1 [shape = 'u32[144,128]{1,0:T(1,128)}', space=vmem, size = 0x12000, scoped, tag = 'internal scratch']
  %s0 = inlined_call_operand.hbm [shape: f32[2,1024], index: 0, kind: input, shape index: {}]
  %s1 = inlined_call_operand.hbm [shape: f32[2,1024], index: 1, kind: output, shape index: {}]
  %s2 = sld [smem:[#allocation0]]
  $region18: #{tpu_custom_call.1} parent=0
    _
  %s4 = ssub.s32 1, %s2
  %s5 = scalar_select 0, %s4, %s2
  $region1: #{tpu_custom_call.1} parent=0
    #allocation2 [shape = 'u8[8192]{0}', space=vmem, size = 0x2000, scoped, tag = 'input window, operand 0, single buffered']
    #allocation3 [shape = 's32[1]{0}', space=sflag, size = 0x4, scoped, tag = 'scoped memory for tpu_custom_call.1']
    #allocation4 [shape = 's32[1]{0}', space=sflag, size = 0x4, scoped, tag = 'scoped memory for tpu_custom_call.1']
    #allocation5 [shape = 'u8[8192]{0}', space=vmem, size = 0x2000, scoped, tag = 'output window, operand 0, single buffered']
    %6 = vsyncpa [#allocation3], 0
    %7 = vsyncpa [#allocation4], 0
    // Predicated region
    $region2: #{tpu_custom_call.1} parent=1 // pred_check
      _
    $region3: #{tpu_custom_call.1} parent=1 // pred_check_branch
      %9 = sbr.rel (0) target = $region5
    $region4: #{tpu_custom_call.1} parent=1 // pred_region
      %s11 = ssub.s32 256, 256
      %12 = vsyncadd [#allocation3], %s11
      %s14 = sshll.u32 [#allocation2], 4
      %s15 = int_to_ptr.vmem [resolvable:$true] %s14
      %17 = dma.hbm_to_vmem [thread:$0]  %s0, 256, %s15, [#allocation3]
    $region5: #{tpu_custom_call.1} parent=1 // pred_fallthru
      _
    // Predicated region
    $region6: #{tpu_custom_call.1} parent=1 // pred_check
      _
    $region7: #{tpu_custom_call.1} parent=1 // pred_check_branch
      %19 = sbr.rel (0) target = $region9
    $region8: #{tpu_custom_call.1} parent=1 // pred_region
      %20 = dma.done [#allocation3], 256
    $region9: #{tpu_custom_call.1} parent=1 // pred_fallthru
      _
    %v21 = vld [vmem:[#allocation2] sm:$0xff]
    %v22 = vld [vmem:[#allocation2 + $0x8] sm:$0xff]
    %v23 = vand.u32 2147483647, %v21
    %vm24 = vcmp.le.f32.partialorder %v23, 0.7853982
    %vm25 = vcmp.lt.s32.totalorder %v21, 0
    %v26 = vand.u32 %v21, 2139095040
    %v27 = vshrl.u32 %v26, 23
    %v28 = vsub.s32 %v27, 127
    %v29 = vand.u32 2147483647, %v21
    %v30 = vand.u32 %v29, 8388607
    %v31 = vor.u32 %v30, 8388608
    %v32 = vsub.s32 0, %v31
    %v33 = vadd.s32 %v28, 1
    %vm34 = vcmp.gt.s32.totalorder %v33, 0
    %v35 = vsel %vm34, %v33, 0
    %v36 = vshrl.u32 %v35, 5
    %v37 = vand.u32 %v35, 31
    %v38 = vsub.s32 32, %v37
    %v39 = vshrl.u32 683565275, %v38
    %v40 = vshll.u32 683565275, %v37
    %v41 = vshrl.u32 2475754826, %v38
    %v42 = vor.u32 %v40, %v41
    %v43 = vshll.u32 2475754826, %v37
    %v44 = vshrl.u32 2131351028, %v38
    %v45 = vor.u32 %v43, %v44
    %v46 = vshll.u32 2131351028, %v37
    %v47 = vshrl.u32 2102212464, %v38
    %v48 = vor.u32 %v46, %v47
    %v49 = vshll.u32 2102212464, %v37
    %v50 = vshrl.u32 920167782, %v38
    %v51 = vor.u32 %v49, %v50
    %v52 = vshll.u32 920167782, %v37
    %v53 = vshrl.u32 1326507024, %v38
    %v54 = vor.u32 %v52, %v53
    %vm55 = vcmp.lt.s32.totalorder %v36, 1
    %vm56 = vcmp.lt.s32.totalorder %v36, 2
    %vm57 = vcmp.lt.s32.totalorder %v36, 3
    %vm58 = vcmp.lt.s32.totalorder %v36, 4
    %v59 = vsel %vm55, %v39, %v42
    %v60 = vsel %vm58, %v48, 2102212464
    %v61 = vsel %vm57, %v45, %v60
    %v62 = vsel %vm56, %v59, %v61
    %v63 = vsel %vm55, %v42, %v45
    %v64 = vsel %vm58, %v51, 920167782
    %v65 = vsel %vm57, %v48, %v64
    %v66 = vsel %vm56, %v63, %v65
    %v67 = vsel %vm55, %v45, %v48
    %v68 = vsel %vm58, %v54, 1326507024
    %v69 = vsel %vm57, %v51, %v68
    %v70 = vsel %vm56, %v67, %v69
    %v71 = vshll.u32 %v31, 8
    %v72 = vmul.u32.u64.compose %v71, %v70
    %v73 = vextract.low.u32 %v72
    %v74 = vextract.high.u32 %v72
    %v75 = vmul.u32.u64.compose %v71, %v66
    %v76 = vextract.low.u32 %v75
    %v77 = vextract.high.u32 %v75
    %v78 = vmul.u32 %v71, %v62
    %v79 = vadd.s32 %v74, %v76
    %vm80 = vc.u32 %v74, %v76
    %v81 = vadd.s32 %v77, 1
    %v82 = vsel %vm80, %v81, %v77
    %v83 = vadd.s32 %v78, %v82
    %v84 = vadd.s32 %v83, 536870912
    %v85 = vshrl.u32 %v84, 30
    %v86 = vshll.u32 %v85, 30
    %v87 = vsub.s32 %v83, %v86
    %vm88 = vcmp.lt.s32.totalorder %v87, 0
    %v89 = vsub.s32 0, %v87
    %v90 = vsel %vm88, %v89, %v87
    %v91 = vclz %v90
    %v92 = vsub.s32 %v91, 2
    %vm93 = vcmp.gt.s32.totalorder 0, %v92
    %v94 = vsel %vm93, 0, %v92
    %v95 = vsub.s32 32, %v94
    %v96 = vshll.u32 %v87, %v94
    %v97 = vshrl.u32 %v79, %v95
    %v98 = vor.u32 %v96, %v97
    %v99 = vsub.s32 4294967266, %v94
    %v100 = vadd.s32 %v99, 127
    %v101 = vshll.u32 %v100, 23
    %v102 = vor.u32 4788187, %v101
    %v103 = vand.u32 2147483647, %v102
    %v105 = vcvt.s32.f32 %v98
    %v106 = vmul.f32 %v105, %v103
    %v107 = vxor.u32 %v106, 2147483648
    %v108 = vsel %vm25, %v107, %v106
    %v109 = vsub.s32 4, %v85
    %v110 = vsel %vm25, %v109, %v85
    %v111 = vsel %vm24, %v21, %v108
    %v112 = vsel %vm24, 0, %v110
    %v113 = vcosq.f32.pop %v111
    %v114 = vsinq.f32.pop %v111
    %vm115 = vweird.f32 %v21
    %v116 = vadd.s32 %v112, 3
    %v117 = vand.u32 %v116, 3
    %vm118 = vcmp.lt.s32.totalorder %v117, 2
    %vm119 = vcmp.eq.s32.totalorder %v117, 0
    %v120 = vxor.u32 %v114, 2147483648
    %v121 = vsel %vm119, %v113, %v120
    %vm122 = vcmp.eq.s32.totalorder %v117, 2
    %v123 = vxor.u32 %v113, 2147483648
    %v124 = vsel %vm122, %v123, %v114
    %v125 = vsel %vm118, %v121, %v124
    %v126 = vsel %vm115, nan, %v125
    %v127 = vand.u32 2147483647, %v22
    %vm128 = vcmp.le.f32.partialorder %v127, 0.7853982
    %vm129 = vcmp.lt.s32.totalorder %v22, 0
    %v130 = vand.u32 %v22, 2139095040
    %v131 = vshrl.u32 %v130, 23
    %v132 = vsub.s32 %v131, 127
    %v133 = vand.u32 2147483647, %v22
    %v134 = vand.u32 %v133, 8388607
    %v135 = vor.u32 %v134, 8388608
    %v136 = vsub.s32 0, %v135
    %v137 = vadd.s32 %v132, 1
    %vm138 = vcmp.gt.s32.totalorder %v137, 0
    %v139 = vsel %vm138, %v137, 0
    %v140 = vshrl.u32 %v139, 5
    %v141 = vand.u32 %v139, 31
    %v142 = vsub.s32 32, %v141
    %v143 = vshrl.u32 683565275, %v142
    %v144 = vshll.u32 683565275, %v141
    %v145 = vshrl.u32 2475754826, %v142
    %v146 = vor.u32 %v144, %v145
    %v147 = vshll.u32 2475754826, %v141
    %v148 = vshrl.u32 2131351028, %v142
    %v149 = vor.u32 %v147, %v148
    %v150 = vshll.u32 2131351028, %v141
    %v151 = vshrl.u32 2102212464, %v142
    %v152 = vor.u32 %v150, %v151
    %v153 = vshll.u32 2102212464, %v141
    %v154 = vshrl.u32 920167782, %v142
    %v155 = vor.u32 %v153, %v154
    %v156 = vshll.u32 920167782, %v141
    %v157 = vshrl.u32 1326507024, %v142
    %v158 = vor.u32 %v156, %v157
    %vm159 = vcmp.lt.s32.totalorder %v140, 1
    %vm160 = vcmp.lt.s32.totalorder %v140, 2
    %vm161 = vcmp.lt.s32.totalorder %v140, 3
    %vm162 = vcmp.lt.s32.totalorder %v140, 4
    %v163 = vsel %vm159, %v143, %v146
    %v164 = vsel %vm162, %v152, 2102212464
    %v165 = vsel %vm161, %v149, %v164
    %v166 = vsel %vm160, %v163, %v165
    %v167 = vsel %vm159, %v146, %v149
    %v168 = vsel %vm162, %v155, 920167782
    %v169 = vsel %vm161, %v152, %v168
    %v170 = vsel %vm160, %v167, %v169
    %v171 = vsel %vm159, %v149, %v152
    %v172 = vsel %vm162, %v158, 1326507024
    %v173 = vsel %vm161, %v155, %v172
    %v174 = vsel %vm160, %v171, %v173
    %v175 = vshll.u32 %v135, 8
    %v176 = vmul.u32.u64.compose %v175, %v174
    %v177 = vextract.low.u32 %v176
    %v178 = vextract.high.u32 %v176
    %v179 = vmul.u32.u64.compose %v175, %v170
    %v180 = vextract.low.u32 %v179
    %v181 = vextract.high.u32 %v179
    %v182 = vmul.u32 %v175, %v166
    %v183 = vadd.s32 %v178, %v180
    %vm184 = vc.u32 %v178, %v180
    %v185 = vadd.s32 %v181, 1
    %v186 = vsel %vm184, %v185, %v181
    %v187 = vadd.s32 %v182, %v186
    %v188 = vadd.s32 %v187, 536870912
    %v189 = vshrl.u32 %v188, 30
    %v190 = vshll.u32 %v189, 30
    %v191 = vsub.s32 %v187, %v190
    %vm192 = vcmp.lt.s32.totalorder %v191, 0
    %v193 = vsub.s32 0, %v191
    %v194 = vsel %vm192, %v193, %v191
    %v195 = vclz %v194
    %v196 = vsub.s32 %v195, 2
    %vm197 = vcmp.gt.s32.totalorder 0, %v196
    %v198 = vsel %vm197, 0, %v196
    %v199 = vsub.s32 32, %v198
    %v200 = vshll.u32 %v191, %v198
    %v201 = vshrl.u32 %v183, %v199
    %v202 = vor.u32 %v200, %v201
    %v203 = vsub.s32 4294967266, %v198
    %v204 = vadd.s32 %v203, 127
    %v205 = vshll.u32 %v204, 23
    %v206 = vor.u32 4788187, %v205
    %v207 = vand.u32 2147483647, %v206
    %v209 = vcvt.s32.f32 %v202
    %v210 = vmul.f32 %v209, %v207
    %v211 = vxor.u32 %v210, 2147483648
    %v212 = vsel %vm129, %v211, %v210
    %v213 = vsub.s32 4, %v189
    %v214 = vsel %vm129, %v213, %v189
    %v215 = vsel %vm128, %v22, %v212
    %v216 = vsel %vm128, 0, %v214
    %v217 = vcosq.f32.pop %v215
    %v218 = vsinq.f32.pop %v215
    %vm219 = vweird.f32 %v22
    %v220 = vadd.s32 %v216, 3
    %v221 = vand.u32 %v220, 3
    %vm222 = vcmp.lt.s32.totalorder %v221, 2
    %vm223 = vcmp.eq.s32.totalorder %v221, 0
    %v224 = vxor.u32 %v218, 2147483648
    %v225 = vsel %vm223, %v217, %v224
    %vm226 = vcmp.eq.s32.totalorder %v221, 2
    %v227 = vxor.u32 %v217, 2147483648
    %v228 = vsel %vm226, %v227, %v218
    %v229 = vsel %vm222, %v225, %v228
    %v230 = vsel %vm219, nan, %v229
    %v231 = vadd.f32 %v21, %v126
    %v232 = vadd.f32 %v22, %v230
    %v233 = vxor.u32 %v21, 2147483648
    %v234 = vxor.u32 %v22, 2147483648
    %v235 = vmul.f32 %v233, 1.442695
    %v236 = vpow.pop %v235
    %v237 = vmul.f32 %v234, 1.442695
    %v238 = vpow.pop %v237
    %v239 = vadd.f32 %v236, 1.0
    %v240 = vadd.f32 %v238, 1.0
    %v241 = vrcp.pop %v239
    %v242 = vmul.f32 1.0, %v241
    %v243 = vrcp.pop %v240
    %v244 = vmul.f32 1.0, %v243
    %v245 = vmul.f32 %v231, %v242
    %v246 = vmul.f32 %v232, %v244
    %247 = vst [vmem:[#allocation5] sm:$0xff] %v245
    %248 = vst [vmem:[#allocation5 + $0x8] sm:$0xff] %v246
    // Predicated region
    $region10: #{tpu_custom_call.1} parent=1 // pred_check
      _
    $region11: #{tpu_custom_call.1} parent=1 // pred_check_branch
      %250 = sbr.rel (0) target = $region13
    $region12: #{tpu_custom_call.1} parent=1 // pred_region
      %s252 = ssub.s32 256, 256
      %253 = vsyncadd [#allocation4], %s252
      %s255 = sshll.u32 [#allocation5], 4
      %s256 = int_to_ptr.vmem [resolvable:$true] %s255
      %258 = dma.vmem_to_hbm [thread:$0]  %s256, 256, %s1, [#allocation4]
    $region13: #{tpu_custom_call.1} parent=1 // pred_fallthru
      _
    // Predicated region
    $region14: #{tpu_custom_call.1} parent=1 // pred_check
      _
    $region15: #{tpu_custom_call.1} parent=1 // pred_check_branch
      %260 = sbr.rel (0) target = $region17
    $region16: #{tpu_custom_call.1} parent=1 // pred_region
      %261 = dma.done [#allocation4], 256
    $region17: #{tpu_custom_call.1} parent=1 // pred_fallthru
      _
    %262 = vsyncpa [#allocation3], 1
    %263 = vsyncpa [#allocation4], 1

</llo_original>
